<compile_context>
chip_gen: v7x
topology: tpu7x:2x2x1
jax: 0.10.0
libtpu: 0.0.40
codegen_flags: <defaults>
</compile_context>

<pallas_src>
import functools

import jax
import jax.numpy as jnp
from jax.experimental import pallas as pl
from jax.experimental.pallas import tpu as pltpu


def _round_up(v, m):
    return (v + m - 1) // m * m


def _gcn_stream_kernel(g_ref, x_ref, dm_ref, o_ref):
    # g_ref : (1, t_m, t_k)   bf16 adjacency tile
    # x_ref : (1, t_k, Hp)    bf16 pre-scaled feature K-strip
    # dm_ref: (1, t_m, 1)     f32 rsqrt(deg) for this M-tile's rows
    # o_ref : (1, t_m, Hp)    f32 output tile (resident across the K axis)
    k = pl.program_id(2)

    @pl.when(k == 0)
    def _init():
        o_ref[...] = jnp.zeros_like(o_ref)

    # bf16 x bf16 -> f32 accumulate on the MXU (no f32 upcast of the adjacency).
    o_ref[0] += jnp.dot(g_ref[0], x_ref[0], preferred_element_type=jnp.float32)

    @pl.when(k == pl.num_programs(2) - 1)
    def _finalize():
        # Scale output rows by rsqrt(deg_i); dropout = identity (eval); ReLU.
        o_ref[0] = jnp.maximum(dm_ref[0] * o_ref[0], 0.0)


def _gcn_resident_kernel(t_k, g_ref, x_ref, dm_ref, o_ref):
    # Resident-x variant: the full (pre-scaled, bf16) per-batch feature slab
    # stays in VMEM; the kernel slices the K strip itself, so x is DMA'd once
    # per batch instead of once per (i, k) tile.
    # x_ref : (1, n_pad, Hp) bf16
    k = pl.program_id(2)

    @pl.when(k == 0)
    def _init():
        o_ref[...] = jnp.zeros_like(o_ref)

    start = pl.multiple_of(k * t_k, t_k)
    xs = x_ref[0, pl.ds(start, t_k), :]
    o_ref[0] += jnp.dot(g_ref[0], xs, preferred_element_type=jnp.float32)

    @pl.when(k == pl.num_programs(2) - 1)
    def _finalize():
        o_ref[0] = jnp.maximum(dm_ref[0] * o_ref[0], 0.0)


def gcn_layer_forward(x, graph):
    """GCNLayer.forward (eval mode) as a Pallas TPU kernel.

      out = relu((graph / sqrt(N_u * N_u^T)) @ x),   N_u = graph.sum(-1)

    Implemented as out = D^{-1/2} * (A @ (D^{-1/2} * x)), D = diag(degree).

    x:     [bsz, N, H] float
    graph: [bsz, N, N] any numeric dtype (0/1 adjacency recommended)
    returns [bsz, N, H] float32
    """
    bsz, n, h = x.shape
    assert graph.shape == (bsz, n, n)

    # Degree + rsqrt in a single pass (no separate f32 copy of the adjacency).
    deg = jnp.sum(graph, axis=-1, dtype=jnp.float32)           # (B, N)
    d = jax.lax.rsqrt(deg)                                     # Inf if deg == 0 (matches torch 0-div)

    n128 = _round_up(n, 128)
    h_pad = _round_up(h, 128)
    if n128 >= 512:
        t_k = 256
        # Keep 2x-buffered (adj + x + out) blocks under v5e's 16 MiB scoped default.
        t_m = 512 if h_pad <= 2048 else 256
        n_pad = _round_up(n, t_m)                              # t_k divides t_m
    else:
        t_m = t_k = n_pad = n128

    # Adjacency in bf16 for the MXU (v7x MXU has no int path; bf16 exact for 0/1).
    g = graph.astype(jnp.bfloat16)
    if n_pad != n:
        g = jnp.pad(g, ((0, 0), (0, n_pad - n), (0, n_pad - n)))

    # Pre-scale x by rsqrt(deg_j) (column normalization), cast to bf16, pad.
    xs = (x.astype(jnp.float32) * d[..., None]).astype(jnp.bfloat16)
    if n_pad != n or h_pad != h:
        xs = jnp.pad(xs, ((0, 0), (0, n_pad - n), (0, h_pad - h)))

    # rsqrt(deg_i) for output rows; padded rows get 0 so the pad region stays finite.
    dm = d[..., None]
    if n_pad != n:
        dm = jnp.pad(dm, ((0, 0), (0, n_pad - n), (0, 0)))

    grid = (bsz, n_pad // t_m, n_pad // t_k)

    # Resident-x path when the per-batch bf16 feature slab is small (conservative
    # for v7x's 64 MiB VMEM / v5e's 16 MiB scoped default, with double-buffering).
    resident = (n_pad * h_pad * 2) <= (2 << 20)

    if resident:
        kernel = functools.partial(_gcn_resident_kernel, t_k)
        x_spec = pl.BlockSpec((1, n_pad, h_pad), lambda b, i, k: (b, 0, 0))
    else:
        kernel = _gcn_stream_kernel
        x_spec = pl.BlockSpec((1, t_k, h_pad), lambda b, i, k: (b, k, 0))

    out_p = pl.pallas_call(
        kernel,
        out_shape=jax.ShapeDtypeStruct((bsz, n_pad, h_pad), jnp.float32),
        grid_spec=pltpu.PrefetchScalarGridSpec(
            num_scalar_prefetch=0,
            grid=grid,
            in_specs=[
                pl.BlockSpec((1, t_m, t_k), lambda b, i, k: (b, i, k)),   # adjacency tile (bf16)
                x_spec,                                                   # pre-scaled features (bf16)
                pl.BlockSpec((1, t_m, 1), lambda b, i, k: (b, i, 0)),     # rsqrt(deg) for output rows
            ],
            out_specs=pl.BlockSpec((1, t_m, h_pad), lambda b, i, k: (b, i, 0)),
        ),
        compiler_params=pltpu.CompilerParams(
            # batch & M tiles are independent (shard across TensorCores on v7x);
            # K is the reduction axis -> sequential.
            dimension_semantics=("parallel", "parallel", "arbitrary"),
        ),
    )(g, xs, dm)

    return out_p[:, :n, :h]


if __name__ == "__main__":
    key = jax.random.PRNGKey(0)
    k_x, k_g = jax.random.split(key, 2)

    bsz, node_num, hid_size = 2, 8, 32
    dropout = 0.1  # identity at eval

    # Example inputs: adjacency with self-loops so every row degree >= 1.
    x = jax.random.normal(k_x, (bsz, node_num, hid_size), dtype=jnp.float32)
    adj = (jax.random.uniform(k_g, (bsz, node_num, node_num)) > 0.5).astype(jnp.float32)
    eye = jnp.eye(node_num, dtype=jnp.float32)[None]
    graph = jnp.clip(adj + eye, 0.0, 1.0)

    out = jax.block_until_ready(gcn_layer_forward(x, graph))

    # Reference: plain-JAX transcription of the PyTorch module (eval mode).
    g32 = graph.astype(jnp.float32)
    n_u = jnp.sum(g32, axis=-1, keepdims=True)
    denom = jnp.sqrt(n_u * jnp.swapaxes(n_u, 1, 2))
    ref = jnp.maximum(jnp.einsum("bij,bjh->bih", g32 / denom, x), 0.0)

    assert out.shape == ref.shape
    # bf16 MXU operands (exact 0/1 adjacency, ~8-bit-mantissa features) -> loose tol.
    err = jnp.max(jnp.abs(out - ref))
    assert jnp.allclose(out, ref, atol=2e-2, rtol=2e-2), f"mismatch vs reference, max abs err {err}"

    print("KERNEL_OK")
</pallas_src>

<mosaic_0001>
module attributes {stable_mosaic.version = 11 : i64} {
  func.func @_gcn_resident_kernel(%arg0: i32, %arg1: i32, %arg2: i32, %arg3: memref<1x128x128xbf16, #tpu.memory_space<vmem>>, %arg4: memref<1x128x128xbf16, #tpu.memory_space<vmem>>, %arg5: memref<1x128x1xf32, #tpu.memory_space<vmem>>, %arg6: memref<1x128x128xf32, #tpu.memory_space<vmem>>) attributes {dimension_semantics = [#tpu.dimension_semantics<parallel>, #tpu.dimension_semantics<parallel>, #tpu.dimension_semantics<arbitrary>], iteration_bounds = array<i64: 2, 1, 1>, scalar_prefetch = 0 : i64, scratch_operands = 0 : i64, tpu.core_type = #tpu.core_type<tc>, window_params = [{transform_indices = @transform_0, window_bounds = array<i64: 1, 128, 128>}, {transform_indices = @transform_1, window_bounds = array<i64: 1, 128, 128>}, {transform_indices = @transform_2, window_bounds = array<i64: 1, 128, 1>}, {transform_indices = @transform_3, window_bounds = array<i64: 1, 128, 128>}]} {
    %c0_i32 = arith.constant 0 : i32
    %0 = arith.cmpi eq, %arg2, %c0_i32 : i32
    %1 = arith.extui %0 : i1 to i32
    %c0_i32_0 = arith.constant 0 : i32
    %2 = arith.cmpi ne, %1, %c0_i32_0 : i32
    scf.if %2 {
      %cst_13 = arith.constant 0.000000e+00 : f32
      %20 = vector.broadcast %cst_13 : f32 to vector<1x128x128xf32>
      %c0_14 = arith.constant 0 : index
      %c0_15 = arith.constant 0 : index
      %c0_16 = arith.constant 0 : index
      %21 = vector.load %arg6[%c0_14, %c0_15, %c0_16] : memref<1x128x128xf32, #tpu.memory_space<vmem>>, vector<1x128x128xf32>
      tpu.vector_store %arg6[%c0_14, %c0_15, %c0_16], %20 {strides = array<i32>} : memref<1x128x128xf32, #tpu.memory_space<vmem>>, vector<1x128x128xf32>,
    } else {
    }
    %c128_i32 = arith.constant 128 : i32
    %3 = arith.muli %arg2, %c128_i32 : i32
    %4 = tpu.assume_multiple %3, 128 : i32
    %c0 = arith.constant 0 : index
    %5 = arith.index_cast %4 : i32 to index
    %c0_1 = arith.constant 0 : index
    %6 = vector.load %arg4[%c0, %5, %c0_1] : memref<1x128x128xbf16, #tpu.memory_space<vmem>>, vector<1x128x128xbf16>
    %7 = vector.shape_cast %6 : vector<1x128x128xbf16> to vector<128x128xbf16>
    %c0_2 = arith.constant 0 : index
    %c0_3 = arith.constant 0 : index
    %c0_4 = arith.constant 0 : index
    %8 = vector.load %arg6[%c0_2, %c0_3, %c0_4] : memref<1x128x128xf32, #tpu.memory_space<vmem>>, vector<1x128x128xf32>
    %9 = vector.shape_cast %8 : vector<1x128x128xf32> to vector<128x128xf32>
    %c0_5 = arith.constant 0 : index
    %c0_6 = arith.constant 0 : index
    %c0_7 = arith.constant 0 : index
    %10 = vector.load %arg3[%c0_5, %c0_6, %c0_7] : memref<1x128x128xbf16, #tpu.memory_space<vmem>>, vector<1x128x128xbf16>
    %11 = vector.shape_cast %10 : vector<1x128x128xbf16> to vector<128x128xbf16>
    %cst = arith.constant dense<0.000000e+00> : vector<128x128xf32>
    %12 = tpu.matmul %11, %7, %cst {dimension_numbers = #tpu.dot_dimension_numbers<[1], [0], [0], [1], [0, 0, 1, 1], [], []>} : vector<128x128xbf16>, vector<128x128xbf16>, vector<128x128xf32> -> vector<128x128xf32>
    %13 = arith.addf %9, %12 : vector<128x128xf32>
    %c0_8 = arith.constant 0 : index
    %c0_9 = arith.constant 0 : index
    %c0_10 = arith.constant 0 : index
    %14 = vector.load %arg6[%c0_8, %c0_9, %c0_10] : memref<1x128x128xf32, #tpu.memory_space<vmem>>, vector<1x128x128xf32>
    %15 = vector.shape_cast %14 : vector<1x128x128xf32> to vector<128x128xf32>
    %16 = vector.shape_cast %13 : vector<128x128xf32> to vector<1x128x128xf32>
    tpu.vector_store %arg6[%c0_8, %c0_9, %c0_10], %16 {strides = array<i32>} : memref<1x128x128xf32, #tpu.memory_space<vmem>>, vector<1x128x128xf32>,
    %c0_i32_11 = arith.constant 0 : i32
    %17 = arith.cmpi eq, %arg2, %c0_i32_11 : i32
    %18 = arith.extui %17 : i1 to i32
    %c0_i32_12 = arith.constant 0 : i32
    %19 = arith.cmpi ne, %18, %c0_i32_12 : i32
    scf.if %19 {
      %c0_13 = arith.constant 0 : index
      %c0_14 = arith.constant 0 : index
      %c0_15 = arith.constant 0 : index
      %20 = vector.load %arg5[%c0_13, %c0_14, %c0_15] : memref<1x128x1xf32, #tpu.memory_space<vmem>>, vector<1x128x1xf32>
      %21 = vector.shape_cast %20 : vector<1x128x1xf32> to vector<128x1xf32>
      %c0_16 = arith.constant 0 : index
      %c0_17 = arith.constant 0 : index
      %c0_18 = arith.constant 0 : index
      %22 = vector.load %arg6[%c0_16, %c0_17, %c0_18] : memref<1x128x128xf32, #tpu.memory_space<vmem>>, vector<1x128x128xf32>
      %23 = vector.shape_cast %22 : vector<1x128x128xf32> to vector<128x128xf32>
      %24 = vector.broadcast %21 : vector<128x1xf32> to vector<128x128xf32>
      %25 = arith.mulf %24, %23 : vector<128x128xf32>
      %cst_19 = arith.constant 0.000000e+00 : f32
      %26 = vector.broadcast %cst_19 : f32 to vector<128x128xf32>
      %27 = arith.maximumf %25, %26 : vector<128x128xf32>
      %c0_20 = arith.constant 0 : index
      %c0_21 = arith.constant 0 : index
      %c0_22 = arith.constant 0 : index
      %28 = vector.load %arg6[%c0_20, %c0_21, %c0_22] : memref<1x128x128xf32, #tpu.memory_space<vmem>>, vector<1x128x128xf32>
      %29 = vector.shape_cast %28 : vector<1x128x128xf32> to vector<128x128xf32>
      %30 = vector.shape_cast %27 : vector<128x128xf32> to vector<1x128x128xf32>
      tpu.vector_store %arg6[%c0_20, %c0_21, %c0_22], %30 {strides = array<i32>} : memref<1x128x128xf32, #tpu.memory_space<vmem>>, vector<1x128x128xf32>,
    } else {
    }
    return
  }
  func.func @transform_0(%arg0: i32, %arg1: i32, %arg2: i32) -> (i32, i32, i32) {
    %c0_i32 = arith.constant 0 : i32
    return %arg0, %arg1, %arg2 : i32, i32, i32
  }
  func.func @transform_1(%arg0: i32, %arg1: i32, %arg2: i32) -> (i32, i32, i32) {
    %c0_i32 = arith.constant 0 : i32
    %c0_i32_0 = arith.constant 0 : i32
    %c0_i32_1 = arith.constant 0 : i32
    return %arg0, %c0_i32, %c0_i32_0 : i32, i32, i32
  }
  func.func @transform_2(%arg0: i32, %arg1: i32, %arg2: i32) -> (i32, i32, i32) {
    %c0_i32 = arith.constant 0 : i32
    %c0_i32_0 = arith.constant 0 : i32
    return %arg0, %arg1, %c0_i32 : i32, i32, i32
  }
  func.func @transform_3(%arg0: i32, %arg1: i32, %arg2: i32) -> (i32, i32, i32) {
    %c0_i32 = arith.constant 0 : i32
    %c0_i32_0 = arith.constant 0 : i32
    return %arg0, %arg1, %c0_i32 : i32, i32, i32
  }
}

</mosaic_0001>

<llo_original>
// kernel: tpu_custom_call.1
$region0: #{tpu_custom_call.1}
  #allocation0 [shape = 'u32[]', space=smem, size = 0x4, offset = 0x4, fixed_abs, tag = 'smem constant byte address 0x4 - core index']
  #allocation1 [shape = 'u32[144,128]{1,0:T(1,128)}', space=vmem, size = 0x12000, scoped, tag = 'internal scratch']
  %s0 = inlined_call_operand.vmem [shape: bf16[2,128,128], index: 0, kind: input, shape index: {}]
  %s1 = inlined_call_operand.vmem [shape: bf16[2,128,128], index: 1, kind: input, shape index: {}]
  %s2 = inlined_call_operand.vmem [shape: f32[2,128,1], index: 2, kind: input, shape index: {}]
  %s3 = inlined_call_operand.hbm [shape: f32[2,128,128], index: 3, kind: output, shape index: {}]
  %s4 = sld [smem:[#allocation0]]
  $region53: #{tpu_custom_call.1} parent=0
    _
  %s6 = ssub.s32 1, %s4
  %s7 = scalar_select 0, %s6, %s4
  $region1: #{tpu_custom_call.1} parent=0
    #allocation2 [shape = 'u8[131072]{0}', space=vmem, size = 0x20000, scoped, tag = 'output window, operand 0']
    #allocation3 [shape = 's32[2]{0}', space=sflag, size = 0x8, scoped, tag = 'scoped memory for tpu_custom_call.1']
    %8 = vsyncpa [#allocation3], 0
    %s9 = scalar_lea.sflag [#allocation3], 1
    %10 = vsyncpa %s9, 0
    loop: start=0, step=1, limit=4
    $region2: #{tpu_custom_call.1} parent=1 // loop_pre_header
      _
    $region3: #{tpu_custom_call.1} parent=1 // loop_header
      %s12 = sphi 0, %s16
      %p13 = scmp.ge.s32.totalorder %s12, 4
      %s19 = sphi 0, %s38
      %s20 = sphi 0, %s34
      %s21 = sphi 0, %s30
      %s22 = sphi 0, %s19
      %s23 = sphi 0, %s20
      %s24 = sphi 0, %s21
      %s25 = sphi 0, %s22
      %s26 = sphi 0, %s23
      %s27 = sphi 0, %s24
      %s45 = sphi 0, %s47
      %s48 = sphi 0, %s45
      %s49 = sphi 0, %s48
      %s65 = sphi 0, %s49
      %s71 = sphi 0, %s73
      %s74 = sphi 0, %s71
      %s75 = sphi 0, %s74
      %s91 = sphi 0, %s75
      %s99 = sphi 0, %s101
      %s102 = sphi 0, %s99
      %s103 = sphi 0, %s102
      %s119 = sphi 0, %s103
      %s127 = sphi 0, %s129
      %s130 = sphi 0, %s127
      %s131 = sphi 0, %s130
      %s147 = sphi 0, %s131
    $region4: #{tpu_custom_call.1} parent=1 // loop_header_branch
      %15 = sbr.rel (%p13) target = $region8
    $region5: #{tpu_custom_call.1} parent=1 // loop_body
      %s17 = ssub.s32 %s12, 1
      %s18 = ssub.s32 %s12, 2
      %s28 = sadd.s32 1, %s21
      %p29 = scmp.ge.s32.totalorder %s28, 1
      %s30 = scalar_select %p29, 0, %s28
      %s31 = sadd.s32 1, %s20
      %s32 = scalar_select %p29, %s31, %s20
      %p33 = scmp.ge.s32.totalorder %s32, 1
      %s34 = scalar_select %p33, 0, %s32
      %s35 = sadd.s32 1, %s19
      %s36 = scalar_select %p33, %s35, %s19
      %p37 = scmp.ge.s32.totalorder %s36, 2
      %s38 = scalar_select %p37, 0, %s36
      %s39 = ssub.s32 %s19, %s38
      %s40 = ssub.s32 %s20, %s34
      %s41 = sor.u32 %s39, %s40
      %s42 = ssub.s32 %s21, %s30
      %s43 = sor.u32 %s41, %s42
      %p44 = scmp.eq.s32.totalorder %s43, 0
      %s46 = sadd.s32 %s45, 1
      %s47 = scalar_select %p44, %s45, %s46
      %p50 = pneg %p44
      %p51 = scmp.eq.s32.totalorder %s12, 1
      %p52 = por %p50, %p51
      %p53 = scmp.ne.s32.totalorder %s45, %s48
      %p54 = scmp.eq.s32.totalorder %s12, 0
      %p55 = por %p53, %p54
      %p56 = scmp.ne.s32.totalorder %s45, %s48
      %p57 = scmp.eq.s32.totalorder %s17, 1
      %p58 = por %p56, %p57
      %p59 = scmp.ne.s32.totalorder %s48, %s49
      %p60 = scmp.eq.s32.totalorder %s17, 0
      %p61 = por %p59, %p60
      %p62 = scmp.ne.s32.totalorder %s48, %s49
      %p63 = scmp.eq.s32.totalorder %s18, 1
      %p64 = por %p62, %p63
      %p66 = scmp.ne.s32.totalorder %s49, %s65
      %p67 = scmp.eq.s32.totalorder %s18, 0
      %p68 = por %p66, %p67
      %s69 = ssub.s32 %s19, %s38
      %p70 = scmp.eq.s32.totalorder %s69, 0
      %s72 = sadd.s32 %s71, 1
      %s73 = scalar_select %p70, %s71, %s72
      %p76 = pneg %p70
      %p77 = scmp.eq.s32.totalorder %s12, 1
      %p78 = por %p76, %p77
      %p79 = scmp.ne.s32.totalorder %s71, %s74
      %p80 = scmp.eq.s32.totalorder %s12, 0
      %p81 = por %p79, %p80
      %p82 = scmp.ne.s32.totalorder %s71, %s74
      %p83 = scmp.eq.s32.totalorder %s17, 1
      %p84 = por %p82, %p83
      %p85 = scmp.ne.s32.totalorder %s74, %s75
      %p86 = scmp.eq.s32.totalorder %s17, 0
      %p87 = por %p85, %p86
      %p88 = scmp.ne.s32.totalorder %s74, %s75
      %p89 = scmp.eq.s32.totalorder %s18, 1
      %p90 = por %p88, %p89
      %p92 = scmp.ne.s32.totalorder %s75, %s91
      %p93 = scmp.eq.s32.totalorder %s18, 0
      %p94 = por %p92, %p93
      %s95 = ssub.s32 %s19, %s38
      %s96 = ssub.s32 %s20, %s34
      %s97 = sor.u32 %s95, %s96
      %p98 = scmp.eq.s32.totalorder %s97, 0
      %s100 = sadd.s32 %s99, 1
      %s101 = scalar_select %p98, %s99, %s100
      %p104 = pneg %p98
      %p105 = scmp.eq.s32.totalorder %s12, 1
      %p106 = por %p104, %p105
      %p107 = scmp.ne.s32.totalorder %s99, %s102
      %p108 = scmp.eq.s32.totalorder %s12, 0
      %p109 = por %p107, %p108
      %p110 = scmp.ne.s32.totalorder %s99, %s102
      %p111 = scmp.eq.s32.totalorder %s17, 1
      %p112 = por %p110, %p111
      %p113 = scmp.ne.s32.totalorder %s102, %s103
      %p114 = scmp.eq.s32.totalorder %s17, 0
      %p115 = por %p113, %p114
      %p116 = scmp.ne.s32.totalorder %s102, %s103
      %p117 = scmp.eq.s32.totalorder %s18, 1
      %p118 = por %p116, %p117
      %p120 = scmp.ne.s32.totalorder %s103, %s119
      %p121 = scmp.eq.s32.totalorder %s18, 0
      %p122 = por %p120, %p121
      %s123 = ssub.s32 %s19, %s38
      %s124 = ssub.s32 %s20, %s34
      %s125 = sor.u32 %s123, %s124
      %p126 = scmp.eq.s32.totalorder %s125, 0
      %s128 = sadd.s32 %s127, 1
      %s129 = scalar_select %p126, %s127, %s128
      %p132 = pneg %p126
      %p133 = scmp.eq.s32.totalorder %s12, 1
      %p134 = por %p132, %p133
      %p135 = scmp.ne.s32.totalorder %s127, %s130
      %p136 = scmp.eq.s32.totalorder %s12, 0
      %p137 = por %p135, %p136
      %p138 = scmp.ne.s32.totalorder %s127, %s130
      %p139 = scmp.eq.s32.totalorder %s17, 1
      %p140 = por %p138, %p139
      %p141 = scmp.ne.s32.totalorder %s130, %s131
      %p142 = scmp.eq.s32.totalorder %s17, 0
      %p143 = por %p141, %p142
      %p144 = scmp.ne.s32.totalorder %s130, %s131
      %p145 = scmp.eq.s32.totalorder %s18, 1
      %p146 = por %p144, %p145
      %p148 = scmp.ne.s32.totalorder %s131, %s147
      %p149 = scmp.eq.s32.totalorder %s18, 0
      %p150 = por %p148, %p149
      %p151 = scmp.le.s32.totalorder 1, %s12
      %p152 = scmp.lt.s32.totalorder %s12, 3
      %p153 = pnand %p151, %p152
      %p154 = pneg %p153
      // Predicated region
      $region9: #{tpu_custom_call.1} parent=5 // pred_check
        _
      $region10: #{tpu_custom_call.1} parent=5 // pred_check_branch
        %156 = sbr.rel (%p153) target = $region12
      $region11: #{tpu_custom_call.1} parent=5 // pred_region
        %s157 = ssub.s32 %s12, 1
      $region12: #{tpu_custom_call.1} parent=5 // pred_fallthru
        _
      %p158 = scmp.lt.s32.totalorder %s12, 2
      // Predicated region
      $region13: #{tpu_custom_call.1} parent=5 // pred_check
        %p159 = pneg %p158
      $region14: #{tpu_custom_call.1} parent=5 // pred_check_branch
        %161 = sbr.rel (%p159) target = $region16
      $region15: #{tpu_custom_call.1} parent=5 // pred_region
        // Predicated region
        $region17: #{tpu_custom_call.1} parent=15 // pred_check
          %p162 = pneg %p55
        $region18: #{tpu_custom_call.1} parent=15 // pred_check_branch
          %164 = sbr.rel (%p162) target = $region20
        $region19: #{tpu_custom_call.1} parent=15 // pred_region
          %s165 = smul.u32 16, %s20
          %p166 = scmp.lt.s32.totalorder %s19, 1
          %s167 = scalar_select %p166, %s19, 1
          %p168 = scmp.lt.s32.totalorder %s165, 15
          %s169 = scalar_select %p168, %s165, 15
          %p170 = scmp.lt.s32.totalorder %s21, 0
          %s171 = scalar_select %p170, %s21, 0
          %s172 = sadd.s32 %s171, %s169
          %s173 = smul.addr %s167, 16
          %s174 = sadd.s32 %s172, %s173
          %s175 = smul.addr %s174, 4
          %s176 = scalar_lea.vmem %s0, %s175
          %s177 = smul.u32 16, %s20
        $region20: #{tpu_custom_call.1} parent=15 // pred_fallthru
          _
        // Predicated region
        $region21: #{tpu_custom_call.1} parent=15 // pred_check
          %p178 = pneg %p81
        $region22: #{tpu_custom_call.1} parent=15 // pred_check_branch
          %180 = sbr.rel (%p178) target = $region24
        $region23: #{tpu_custom_call.1} parent=15 // pred_region
          %p181 = scmp.lt.s32.totalorder %s19, 1
          %s182 = scalar_select %p181, %s19, 1
          %s183 = smul.addr %s182, 16
          %s184 = smul.addr %s183, 4
          %s185 = scalar_lea.vmem %s1, %s184
        $region24: #{tpu_custom_call.1} parent=15 // pred_fallthru
          _
        // Predicated region
        $region25: #{tpu_custom_call.1} parent=15 // pred_check
          %p186 = pneg %p109
        $region26: #{tpu_custom_call.1} parent=15 // pred_check_branch
          %188 = sbr.rel (%p186) target = $region28
        $region27: #{tpu_custom_call.1} parent=15 // pred_region
          %s189 = smul.u32 16, %s20
          %p190 = scmp.lt.s32.totalorder %s19, 1
          %s191 = scalar_select %p190, %s19, 1
          %p192 = scmp.lt.s32.totalorder %s189, 15
          %s193 = scalar_select %p192, %s189, 15
          %s194 = smul.addr %s191, 16
          %s195 = sadd.s32 %s193, %s194
          %s196 = smul.addr %s195, 8
          %s197 = scalar_lea.vmem %s2, %s196
          %s198 = smul.u32 16, %s20
        $region28: #{tpu_custom_call.1} parent=15 // pred_fallthru
          _
      $region16: #{tpu_custom_call.1} parent=5 // pred_fallthru
        _
      %p199 = scmp.le.s32.totalorder 1, %s12
      %p200 = scmp.lt.s32.totalorder %s12, 3
      %p201 = pnand %p199, %p200
      %p202 = pneg %p201
      // Predicated region
      $region29: #{tpu_custom_call.1} parent=5 // pred_check
        _
      $region30: #{tpu_custom_call.1} parent=5 // pred_check_branch
        %204 = sbr.rel (%p201) target = $region32
      $region31: #{tpu_custom_call.1} parent=5 // pred_region
        %s205 = ssub.s32 %s12, 1
        %s206 = smul.u32 16, %s23
        %p207 = scmp.lt.s32.totalorder %s22, 1
        %s208 = scalar_select %p207, %s22, 1
        %p209 = scmp.lt.s32.totalorder %s206, 15
        %s210 = scalar_select %p209, %s206, 15
        %p211 = scmp.lt.s32.totalorder %s24, 0
        %s212 = scalar_select %p211, %s24, 0
        %s213 = sadd.s32 %s212, %s210
        %s214 = smul.addr %s208, 16
        %s215 = sadd.s32 %s213, %s214
        %s216 = smul.addr %s215, 4
        %s217 = scalar_lea.vmem %s0, %s216
        %p218 = pneg %p61
        %p219 = pneg %p58
        %p220 = scmp.lt.s32.totalorder %s22, 1
        %s221 = scalar_select %p220, %s22, 1
        %s222 = smul.addr %s221, 16
        %s223 = smul.addr %s222, 4
        %s224 = scalar_lea.vmem %s1, %s223
        %p225 = pneg %p87
        %p226 = pneg %p84
        %s227 = smul.u32 16, %s23
        %p228 = scmp.lt.s32.totalorder %s22, 1
        %s229 = scalar_select %p228, %s22, 1
        %p230 = scmp.lt.s32.totalorder %s227, 15
        %s231 = scalar_select %p230, %s227, 15
        %s232 = smul.addr %s229, 16
        %s233 = sadd.s32 %s231, %s232
        %s234 = smul.addr %s233, 8
        %s235 = scalar_lea.vmem %s2, %s234
        %p236 = pneg %p115
        %p237 = pneg %p112
        %p238 = pneg %p143
        %p239 = pneg %p140
        %s240 = sand.u32 %s130, 1
        %s241 = scalar_lea.sflag [#allocation3], %s240
        %s242 = sand.u32 %s130, 1
        %s243 = smul.addr %s242, 128
        %s244 = scalar_lea.vmem [#allocation2], %s243
        %s245 = smul.u32 16, %s23
        %p246 = scmp.lt.s32.totalorder %s22, 1
        %s247 = scalar_select %p246, %s22, 1
        %p248 = scmp.lt.s32.totalorder %s245, 15
        %s249 = scalar_select %p248, %s245, 15
        %p250 = scmp.lt.s32.totalorder %s24, 0
        %s251 = scalar_select %p250, %s24, 0
        %s252 = sadd.s32 %s251, %s249
        %s253 = smul.addr %s247, 16
        %s254 = sadd.s32 %s252, %s253
        %s255 = smul.addr %s254, 4
        %s256 = scalar_lea.vmem %s0, %s255
        %s257 = smul.u32 16, %s23
        %p258 = scmp.lt.s32.totalorder %s22, 1
        %s259 = scalar_select %p258, %s22, 1
        %s260 = smul.addr %s259, 16
        %s261 = smul.addr %s260, 4
        %s262 = scalar_lea.vmem %s1, %s261
        %s263 = smul.u32 16, %s23
        %p264 = scmp.lt.s32.totalorder %s22, 1
        %s265 = scalar_select %p264, %s22, 1
        %p266 = scmp.lt.s32.totalorder %s263, 15
        %s267 = scalar_select %p266, %s263, 15
        %s268 = smul.addr %s265, 16
        %s269 = sadd.s32 %s267, %s268
        %s270 = smul.addr %s269, 8
        %s271 = scalar_lea.vmem %s2, %s270
        %s272 = smul.u32 16, %s23
        %s273 = smul.u32 16, %s23
        %p275 = scmp.eq.s32.totalorder %s24, 0
        // Predicated region
        $region33: #{tpu_custom_call.1} parent=31 // pred_check
          %p276 = pneg %p275
        $region34: #{tpu_custom_call.1} parent=31 // pred_check_branch
          %278 = sbr.rel (%p276) target = $region36
        $region35: #{tpu_custom_call.1} parent=31 // pred_region
          %279 = vst [vmem:[%s244] sm:$0xff] 0.0
          %280 = vst [vmem:[%s244 + $0x8] sm:$0xff] 0.0
          %281 = vst [vmem:[%s244 + $0x10] sm:$0xff] 0.0
          %282 = vst [vmem:[%s244 + $0x18] sm:$0xff] 0.0
          %283 = vst [vmem:[%s244 + $0x20] sm:$0xff] 0.0
          %284 = vst [vmem:[%s244 + $0x28] sm:$0xff] 0.0
          %285 = vst [vmem:[%s244 + $0x30] sm:$0xff] 0.0
          %286 = vst [vmem:[%s244 + $0x38] sm:$0xff] 0.0
          %287 = vst [vmem:[%s244 + $0x40] sm:$0xff] 0.0
          %288 = vst [vmem:[%s244 + $0x48] sm:$0xff] 0.0
          %289 = vst [vmem:[%s244 + $0x50] sm:$0xff] 0.0
          %290 = vst [vmem:[%s244 + $0x58] sm:$0xff] 0.0
          %291 = vst [vmem:[%s244 + $0x60] sm:$0xff] 0.0
          %292 = vst [vmem:[%s244 + $0x68] sm:$0xff] 0.0
          %293 = vst [vmem:[%s244 + $0x70] sm:$0xff] 0.0
          %294 = vst [vmem:[%s244 + $0x78] sm:$0xff] 0.0
        $region36: #{tpu_custom_call.1} parent=31 // pred_fallthru
          _
        %s295 = smul.u32 %s24, 128
        %s296 = sshra.s32 %s295, 3
        %s297 = sand.u32 %s295, 7
        %s298 = smul.addr %s296, 4
        %s299 = scalar_lea.vmem %s262, %s298
        %v300 = vld [vmem:[%s299] sm:$0xf]
        %v301 = vld [vmem:[%s299 + $0x4] sm:$0xf]
        %v302 = vld [vmem:[%s299 + $0x8] sm:$0xf]
        %v303 = vld [vmem:[%s299 + $0xc] sm:$0xf]
        %v304 = vld [vmem:[%s299 + $0x10] sm:$0xf]
        %v305 = vld [vmem:[%s299 + $0x14] sm:$0xf]
        %v306 = vld [vmem:[%s299 + $0x18] sm:$0xf]
        %v307 = vld [vmem:[%s299 + $0x1c] sm:$0xf]
        %v308 = vld [vmem:[%s299 + $0x20] sm:$0xf]
        %v309 = vld [vmem:[%s299 + $0x24] sm:$0xf]
        %v310 = vld [vmem:[%s299 + $0x28] sm:$0xf]
        %v311 = vld [vmem:[%s299 + $0x2c] sm:$0xf]
        %v312 = vld [vmem:[%s299 + $0x30] sm:$0xf]
        %v313 = vld [vmem:[%s299 + $0x34] sm:$0xf]
        %v314 = vld [vmem:[%s299 + $0x38] sm:$0xf]
        %v315 = vld [vmem:[%s299 + $0x3c] sm:$0xf]
        %v316 = vld [vmem:[%s244] sm:$0xff]
        %v317 = vld [vmem:[%s244 + $0x8] sm:$0xff]
        %v318 = vld [vmem:[%s244 + $0x10] sm:$0xff]
        %v319 = vld [vmem:[%s244 + $0x18] sm:$0xff]
        %v320 = vld [vmem:[%s244 + $0x20] sm:$0xff]
        %v321 = vld [vmem:[%s244 + $0x28] sm:$0xff]
        %v322 = vld [vmem:[%s244 + $0x30] sm:$0xff]
        %v323 = vld [vmem:[%s244 + $0x38] sm:$0xff]
        %v324 = vld [vmem:[%s244 + $0x40] sm:$0xff]
        %v325 = vld [vmem:[%s244 + $0x48] sm:$0xff]
        %v326 = vld [vmem:[%s244 + $0x50] sm:$0xff]
        %v327 = vld [vmem:[%s244 + $0x58] sm:$0xff]
        %v328 = vld [vmem:[%s244 + $0x60] sm:$0xff]
        %v329 = vld [vmem:[%s244 + $0x68] sm:$0xff]
        %v330 = vld [vmem:[%s244 + $0x70] sm:$0xff]
        %v331 = vld [vmem:[%s244 + $0x78] sm:$0xff]
        %v332 = vld [vmem:[%s256] sm:$0xf]
        %v333 = vld [vmem:[%s256 + $0x4] sm:$0xf]
        %v334 = vld [vmem:[%s256 + $0x8] sm:$0xf]
        %v335 = vld [vmem:[%s256 + $0xc] sm:$0xf]
        %v336 = vld [vmem:[%s256 + $0x10] sm:$0xf]
        %v337 = vld [vmem:[%s256 + $0x14] sm:$0xf]
        %v338 = vld [vmem:[%s256 + $0x18] sm:$0xf]
        %v339 = vld [vmem:[%s256 + $0x1c] sm:$0xf]
        %v340 = vld [vmem:[%s256 + $0x20] sm:$0xf]
        %v341 = vld [vmem:[%s256 + $0x24] sm:$0xf]
        %v342 = vld [vmem:[%s256 + $0x28] sm:$0xf]
        %v343 = vld [vmem:[%s256 + $0x2c] sm:$0xf]
        %v344 = vld [vmem:[%s256 + $0x30] sm:$0xf]
        %v345 = vld [vmem:[%s256 + $0x34] sm:$0xf]
        %v346 = vld [vmem:[%s256 + $0x38] sm:$0xf]
        %v347 = vld [vmem:[%s256 + $0x3c] sm:$0xf]
        %v364 = vunpack.c.l.b16 %v332
        %v365 = vunpack.c.l.b16 %v333
        %v366 = vunpack.c.l.b16 %v334
        %v367 = vunpack.c.l.b16 %v335
        %v368 = vunpack.c.l.b16 %v336
        %v369 = vunpack.c.l.b16 %v337
        %v370 = vunpack.c.l.b16 %v338
        %v371 = vunpack.c.l.b16 %v339
        %v372 = vunpack.c.l.b16 %v340
        %v373 = vunpack.c.l.b16 %v341
        %v374 = vunpack.c.l.b16 %v342
        %v375 = vunpack.c.l.b16 %v343
        %v376 = vunpack.c.l.b16 %v344
        %v377 = vunpack.c.l.b16 %v345
        %v378 = vunpack.c.l.b16 %v346
        %v379 = vunpack.c.l.b16 %v347
        %v380 = vpack.c.b16 %v365, %v364
        %v381 = vpack.c.b16 %v367, %v366
        %v382 = vpack.c.b16 %v369, %v368
        %v383 = vpack.c.b16 %v371, %v370
        %v384 = vpack.c.b16 %v373, %v372
        %v385 = vpack.c.b16 %v375, %v374
        %v386 = vpack.c.b16 %v377, %v376
        %v387 = vpack.c.b16 %v379, %v378
        %v412 = vunpack.c.l.b16 %v300
        %v413 = vunpack.c.l.b16 %v301
        %v414 = vunpack.c.l.b16 %v302
        %v415 = vunpack.c.l.b16 %v303
        %v416 = vunpack.c.l.b16 %v304
        %v417 = vunpack.c.l.b16 %v305
        %v418 = vunpack.c.l.b16 %v306
        %v419 = vunpack.c.l.b16 %v307
        %v420 = vunpack.c.l.b16 %v308
        %v421 = vunpack.c.l.b16 %v309
        %v422 = vunpack.c.l.b16 %v310
        %v423 = vunpack.c.l.b16 %v311
        %v424 = vunpack.c.l.b16 %v312
        %v425 = vunpack.c.l.b16 %v313
        %v426 = vunpack.c.l.b16 %v314
        %v427 = vunpack.c.l.b16 %v315
        %v428 = vpack.c.b16 %v413, %v412
        %v429 = vpack.c.b16 %v415, %v414
        %v430 = vpack.c.b16 %v417, %v416
        %v431 = vpack.c.b16 %v419, %v418
        %v432 = vpack.c.b16 %v421, %v420
        %v433 = vpack.c.b16 %v423, %v422
        %v434 = vpack.c.b16 %v425, %v424
        %v435 = vpack.c.b16 %v427, %v426
        %444 = vmatprep.subr.bf16.mxu0 0
        %445 = vmatpush1.bf16.msra.mxu0 %v428
        %446 = vmatprep.subr.bf16.mxu0 0
        %447 = vmatpush1.bf16.msra.mxu0 %v429
        %448 = vmatprep.subr.bf16.mxu0 0
        %449 = vmatpush1.bf16.msra.mxu0 %v430
        %450 = vmatprep.subr.bf16.mxu0 0
        %451 = vmatpush1.bf16.msra.mxu0 %v431
        %452 = vmatprep.subr.bf16.mxu0 0
        %453 = vmatpush1.bf16.msra.mxu0 %v432
        %454 = vmatprep.subr.bf16.mxu0 0
        %455 = vmatpush1.bf16.msra.mxu0 %v433
        %456 = vmatprep.subr.bf16.mxu0 0
        %457 = vmatpush1.bf16.msra.mxu0 %v434
        %458 = vmatprep.subr.bf16.mxu0 0
        %459 = vmatpush1.bf16.msra.mxu0 %v435
        %460 = vmatprep.subr.bf16.mxu0 0
        %461 = vmatpush1.bf16.msra.mxu0 0
        %462 = vmatprep.subr.bf16.mxu0 0
        %463 = vmatpush1.bf16.msra.mxu0 0
        %464 = vmatprep.subr.bf16.mxu0 0
        %465 = vmatpush1.bf16.msra.mxu0 0
        %466 = vmatprep.subr.bf16.mxu0 0
        %467 = vmatpush1.bf16.msra.mxu0 0
        %468 = vmatprep.subr.bf16.mxu0 0
        %469 = vmatpush1.bf16.msra.mxu0 0
        %470 = vmatprep.subr.bf16.mxu0 0
        %471 = vmatpush1.bf16.msra.mxu0 0
        %472 = vmatprep.subr.bf16.mxu0 0
        %473 = vmatpush1.bf16.msra.mxu0 0
        %474 = vmatprep.subr.bf16.mxu0 0
        %475 = vmatpush1.bf16.msra.mxu0 0
        %476 = vmatprep.mubr.bf16.mxu0 0
        %477 = vmatmul.mubr.bf16.gmra.mrb[0].mxu0 %v380
        %v478 = vpop.f32.mrb[0].mxu0
        %v479 = vadd.f32 0.0, %v478
        %v480 = vpop.f32.mrb[0].mxu0
        %v481 = vpop.f32.mrb[0].mxu0
        %v482 = vadd.f32 0.0, %v481
        %v483 = vpop.f32.mrb[0].mxu0
        %484 = vmatprep.mubr.bf16.mxu0 0
        %485 = vmatmul.mubr.bf16.gmra.mrb[0].mxu0 %v381
        %v486 = vpop.f32.mrb[0].mxu0
        %v487 = vadd.f32 0.0, %v486
        %v488 = vpop.f32.mrb[0].mxu0
        %v489 = vpop.f32.mrb[0].mxu0
        %v490 = vadd.f32 0.0, %v489
        %v491 = vpop.f32.mrb[0].mxu0
        %492 = vmatprep.mubr.bf16.mxu0 0
        %493 = vmatmul.mubr.bf16.gmra.mrb[0].mxu0 %v382
        %v494 = vpop.f32.mrb[0].mxu0
        %v495 = vadd.f32 0.0, %v494
        %v496 = vpop.f32.mrb[0].mxu0
        %v497 = vpop.f32.mrb[0].mxu0
        %v498 = vadd.f32 0.0, %v497
        %v499 = vpop.f32.mrb[0].mxu0
        %500 = vmatprep.mubr.bf16.mxu0 0
        %501 = vmatmul.mubr.bf16.gmra.mrb[0].mxu0 %v383
        %v502 = vpop.f32.mrb[0].mxu0
        %v503 = vadd.f32 0.0, %v502
        %v504 = vpop.f32.mrb[0].mxu0
        %v505 = vpop.f32.mrb[0].mxu0
        %v506 = vadd.f32 0.0, %v505
        %v507 = vpop.f32.mrb[0].mxu0
        %508 = vmatprep.mubr.bf16.mxu0 0
        %509 = vmatmul.mubr.bf16.gmra.mrb[0].mxu0 %v384
        %v510 = vpop.f32.mrb[0].mxu0
        %v511 = vadd.f32 0.0, %v510
        %v512 = vpop.f32.mrb[0].mxu0
        %v513 = vpop.f32.mrb[0].mxu0
        %v514 = vadd.f32 0.0, %v513
        %v515 = vpop.f32.mrb[0].mxu0
        %516 = vmatprep.mubr.bf16.mxu0 0
        %517 = vmatmul.mubr.bf16.gmra.mrb[0].mxu0 %v385
        %v518 = vpop.f32.mrb[0].mxu0
        %v519 = vadd.f32 0.0, %v518
        %v520 = vpop.f32.mrb[0].mxu0
        %v521 = vpop.f32.mrb[0].mxu0
        %v522 = vadd.f32 0.0, %v521
        %v523 = vpop.f32.mrb[0].mxu0
        %524 = vmatprep.mubr.bf16.mxu0 0
        %525 = vmatmul.mubr.bf16.gmra.mrb[0].mxu0 %v386
        %v526 = vpop.f32.mrb[0].mxu0
        %v527 = vadd.f32 0.0, %v526
        %v528 = vpop.f32.mrb[0].mxu0
        %v529 = vpop.f32.mrb[0].mxu0
        %v530 = vadd.f32 0.0, %v529
        %v531 = vpop.f32.mrb[0].mxu0
        %532 = vmatprep.mubr.bf16.mxu0 0
        %533 = vmatmul.mubr.bf16.gmra.mrb[0].mxu0 %v387
        %v534 = vpop.f32.mrb[0].mxu0
        %v535 = vadd.f32 0.0, %v534
        %v536 = vpop.f32.mrb[0].mxu0
        %v537 = vpop.f32.mrb[0].mxu0
        %v538 = vadd.f32 0.0, %v537
        %v539 = vpop.f32.mrb[0].mxu0
        %540 = vdwg.mxu0
        %v541 = vadd.f32 %v316, %v479
        %v542 = vadd.f32 %v317, %v482
        %v543 = vadd.f32 %v318, %v487
        %v544 = vadd.f32 %v319, %v490
        %v545 = vadd.f32 %v320, %v495
        %v546 = vadd.f32 %v321, %v498
        %v547 = vadd.f32 %v322, %v503
        %v548 = vadd.f32 %v323, %v506
        %v549 = vadd.f32 %v324, %v511
        %v550 = vadd.f32 %v325, %v514
        %v551 = vadd.f32 %v326, %v519
        %v552 = vadd.f32 %v327, %v522
        %v553 = vadd.f32 %v328, %v527
        %v554 = vadd.f32 %v329, %v530
        %v555 = vadd.f32 %v330, %v535
        %v556 = vadd.f32 %v331, %v538
        %557 = vst [vmem:[%s244] sm:$0xff] %v541
        %558 = vst [vmem:[%s244 + $0x8] sm:$0xff] %v542
        %559 = vst [vmem:[%s244 + $0x10] sm:$0xff] %v543
        %560 = vst [vmem:[%s244 + $0x18] sm:$0xff] %v544
        %561 = vst [vmem:[%s244 + $0x20] sm:$0xff] %v545
        %562 = vst [vmem:[%s244 + $0x28] sm:$0xff] %v546
        %563 = vst [vmem:[%s244 + $0x30] sm:$0xff] %v547
        %564 = vst [vmem:[%s244 + $0x38] sm:$0xff] %v548
        %565 = vst [vmem:[%s244 + $0x40] sm:$0xff] %v549
        %566 = vst [vmem:[%s244 + $0x48] sm:$0xff] %v550
        %567 = vst [vmem:[%s244 + $0x50] sm:$0xff] %v551
        %568 = vst [vmem:[%s244 + $0x58] sm:$0xff] %v552
        %569 = vst [vmem:[%s244 + $0x60] sm:$0xff] %v553
        %570 = vst [vmem:[%s244 + $0x68] sm:$0xff] %v554
        %571 = vst [vmem:[%s244 + $0x70] sm:$0xff] %v555
        %572 = vst [vmem:[%s244 + $0x78] sm:$0xff] %v556
        // Predicated region
        $region37: #{tpu_custom_call.1} parent=31 // pred_check
          %p573 = pneg %p275
        $region38: #{tpu_custom_call.1} parent=31 // pred_check_branch
          %575 = sbr.rel (%p573) target = $region40
        $region39: #{tpu_custom_call.1} parent=31 // pred_region
          %v576 = vld [vmem:[%s271] sm:$0xff]
          %v577 = vld [vmem:[%s271 + $0x8] sm:$0xff]
          %v578 = vld [vmem:[%s271 + $0x10] sm:$0xff]
          %v579 = vld [vmem:[%s271 + $0x18] sm:$0xff]
          %v580 = vld [vmem:[%s271 + $0x20] sm:$0xff]
          %v581 = vld [vmem:[%s271 + $0x28] sm:$0xff]
          %v582 = vld [vmem:[%s271 + $0x30] sm:$0xff]
          %v583 = vld [vmem:[%s271 + $0x38] sm:$0xff]
          %v584 = vld [vmem:[%s271 + $0x40] sm:$0xff]
          %v585 = vld [vmem:[%s271 + $0x48] sm:$0xff]
          %v586 = vld [vmem:[%s271 + $0x50] sm:$0xff]
          %v587 = vld [vmem:[%s271 + $0x58] sm:$0xff]
          %v588 = vld [vmem:[%s271 + $0x60] sm:$0xff]
          %v589 = vld [vmem:[%s271 + $0x68] sm:$0xff]
          %v590 = vld [vmem:[%s271 + $0x70] sm:$0xff]
          %v591 = vld [vmem:[%s271 + $0x78] sm:$0xff]
          %v592 = vld [vmem:[%s244] sm:$0xff]
          %v593 = vld [vmem:[%s244 + $0x8] sm:$0xff]
          %v594 = vld [vmem:[%s244 + $0x10] sm:$0xff]
          %v595 = vld [vmem:[%s244 + $0x18] sm:$0xff]
          %v596 = vld [vmem:[%s244 + $0x20] sm:$0xff]
          %v597 = vld [vmem:[%s244 + $0x28] sm:$0xff]
          %v598 = vld [vmem:[%s244 + $0x30] sm:$0xff]
          %v599 = vld [vmem:[%s244 + $0x38] sm:$0xff]
          %v600 = vld [vmem:[%s244 + $0x40] sm:$0xff]
          %v601 = vld [vmem:[%s244 + $0x48] sm:$0xff]
          %v602 = vld [vmem:[%s244 + $0x50] sm:$0xff]
          %v603 = vld [vmem:[%s244 + $0x58] sm:$0xff]
          %v604 = vld [vmem:[%s244 + $0x60] sm:$0xff]
          %v605 = vld [vmem:[%s244 + $0x68] sm:$0xff]
          %v606 = vld [vmem:[%s244 + $0x70] sm:$0xff]
          %v607 = vld [vmem:[%s244 + $0x78] sm:$0xff]
          %609 = vset.pattern.permute.xlu0 0
          %610 = vperm.xlu0 %609, %v576
          %v611 = vpop.permute.xlu0 %610
          %614 = vset.pattern.permute.xlu0 0
          %615 = vperm.xlu0 %614, %v577
          %v616 = vpop.permute.xlu0 %615
          %619 = vset.pattern.permute.xlu0 0
          %620 = vperm.xlu0 %619, %v578
          %v621 = vpop.permute.xlu0 %620
          %624 = vset.pattern.permute.xlu0 0
          %625 = vperm.xlu0 %624, %v579
          %v626 = vpop.permute.xlu0 %625
          %629 = vset.pattern.permute.xlu0 0
          %630 = vperm.xlu0 %629, %v580
          %v631 = vpop.permute.xlu0 %630
          %634 = vset.pattern.permute.xlu0 0
          %635 = vperm.xlu0 %634, %v581
          %v636 = vpop.permute.xlu0 %635
          %639 = vset.pattern.permute.xlu0 0
          %640 = vperm.xlu0 %639, %v582
          %v641 = vpop.permute.xlu0 %640
          %644 = vset.pattern.permute.xlu0 0
          %645 = vperm.xlu0 %644, %v583
          %v646 = vpop.permute.xlu0 %645
          %649 = vset.pattern.permute.xlu0 0
          %650 = vperm.xlu0 %649, %v584
          %v651 = vpop.permute.xlu0 %650
          %654 = vset.pattern.permute.xlu0 0
          %655 = vperm.xlu0 %654, %v585
          %v656 = vpop.permute.xlu0 %655
          %659 = vset.pattern.permute.xlu0 0
          %660 = vperm.xlu0 %659, %v586
          %v661 = vpop.permute.xlu0 %660
          %664 = vset.pattern.permute.xlu0 0
          %665 = vperm.xlu0 %664, %v587
          %v666 = vpop.permute.xlu0 %665
          %669 = vset.pattern.permute.xlu0 0
          %670 = vperm.xlu0 %669, %v588
          %v671 = vpop.permute.xlu0 %670
          %674 = vset.pattern.permute.xlu0 0
          %675 = vperm.xlu0 %674, %v589
          %v676 = vpop.permute.xlu0 %675
          %679 = vset.pattern.permute.xlu0 0
          %680 = vperm.xlu0 %679, %v590
          %v681 = vpop.permute.xlu0 %680
          %684 = vset.pattern.permute.xlu0 0
          %685 = vperm.xlu0 %684, %v591
          %v686 = vpop.permute.xlu0 %685
          %v688 = vmul.f32 %v611, %v592
          %v689 = vmul.f32 %v616, %v593
          %v690 = vmul.f32 %v621, %v594
          %v691 = vmul.f32 %v626, %v595
          %v692 = vmul.f32 %v631, %v596
          %v693 = vmul.f32 %v636, %v597
          %v694 = vmul.f32 %v641, %v598
          %v695 = vmul.f32 %v646, %v599
          %v696 = vmul.f32 %v651, %v600
          %v697 = vmul.f32 %v656, %v601
          %v698 = vmul.f32 %v661, %v602
          %v699 = vmul.f32 %v666, %v603
          %v700 = vmul.f32 %v671, %v604
          %v701 = vmul.f32 %v676, %v605
          %v702 = vmul.f32 %v681, %v606
          %v703 = vmul.f32 %v686, %v607
          %v704 = vmax.f32 %v688, 0.0
          %v705 = vmax.f32 %v689, 0.0
          %v706 = vmax.f32 %v690, 0.0
          %v707 = vmax.f32 %v691, 0.0
          %v708 = vmax.f32 %v692, 0.0
          %v709 = vmax.f32 %v693, 0.0
          %v710 = vmax.f32 %v694, 0.0
          %v711 = vmax.f32 %v695, 0.0
          %v712 = vmax.f32 %v696, 0.0
          %v713 = vmax.f32 %v697, 0.0
          %v714 = vmax.f32 %v698, 0.0
          %v715 = vmax.f32 %v699, 0.0
          %v716 = vmax.f32 %v700, 0.0
          %v717 = vmax.f32 %v701, 0.0
          %v718 = vmax.f32 %v702, 0.0
          %v719 = vmax.f32 %v703, 0.0
          %720 = vst [vmem:[%s244] sm:$0xff] %v704
          %721 = vst [vmem:[%s244 + $0x8] sm:$0xff] %v705
          %722 = vst [vmem:[%s244 + $0x10] sm:$0xff] %v706
          %723 = vst [vmem:[%s244 + $0x18] sm:$0xff] %v707
          %724 = vst [vmem:[%s244 + $0x20] sm:$0xff] %v708
          %725 = vst [vmem:[%s244 + $0x28] sm:$0xff] %v709
          %726 = vst [vmem:[%s244 + $0x30] sm:$0xff] %v710
          %727 = vst [vmem:[%s244 + $0x38] sm:$0xff] %v711
          %728 = vst [vmem:[%s244 + $0x40] sm:$0xff] %v712
          %729 = vst [vmem:[%s244 + $0x48] sm:$0xff] %v713
          %730 = vst [vmem:[%s244 + $0x50] sm:$0xff] %v714
          %731 = vst [vmem:[%s244 + $0x58] sm:$0xff] %v715
          %732 = vst [vmem:[%s244 + $0x60] sm:$0xff] %v716
          %733 = vst [vmem:[%s244 + $0x68] sm:$0xff] %v717
          %734 = vst [vmem:[%s244 + $0x70] sm:$0xff] %v718
          %735 = vst [vmem:[%s244 + $0x78] sm:$0xff] %v719
        $region40: #{tpu_custom_call.1} parent=31 // pred_fallthru
          _
        %s736 = sand.u32 %s130, 1
        %s737 = scalar_lea.sflag [#allocation3], %s736
        %s738 = sand.u32 %s130, 1
        %s739 = smul.addr %s738, 128
        %s740 = scalar_lea.vmem [#allocation2], %s739
        // Predicated region
        $region41: #{tpu_custom_call.1} parent=31 // pred_check
          %p741 = pneg %p140
        $region42: #{tpu_custom_call.1} parent=31 // pred_check_branch
          %743 = sbr.rel (%p741) target = $region44
        $region43: #{tpu_custom_call.1} parent=31 // pred_region
          %s744 = smul.u32 16, %s23
          %s746 = ssub.s32 2048, 2048
          %747 = vsyncadd %s737, %s746
          %s748 = smul.addr %s22, 16
          %s749 = sadd.s32 %s744, %s748
          %s750 = smul.addr %s749, 128
          %s751 = scalar_lea.hbm %s3, %s750
          %s752 = sshll.u32 %s740, 4
          %s753 = int_to_ptr.vmem [resolvable:$true] %s752
          %758 = dma.vmem_to_hbm [thread:$0]  %s753, 2048, %s751, %s737, 128, 128, 8
        $region44: #{tpu_custom_call.1} parent=31 // pred_fallthru
          _
      $region32: #{tpu_custom_call.1} parent=5 // pred_fallthru
        _
      %p759 = scmp.le.s32.totalorder 2, %s12
      // Predicated region
      $region45: #{tpu_custom_call.1} parent=5 // pred_check
        %p760 = pneg %p759
      $region46: #{tpu_custom_call.1} parent=5 // pred_check_branch
        %762 = sbr.rel (%p760) target = $region48
      $region47: #{tpu_custom_call.1} parent=5 // pred_region
        %s763 = ssub.s32 %s12, 2
        // Predicated region
        $region49: #{tpu_custom_call.1} parent=47 // pred_check
          %p764 = pneg %p146
        $region50: #{tpu_custom_call.1} parent=47 // pred_check_branch
          %766 = sbr.rel (%p764) target = $region52
        $region51: #{tpu_custom_call.1} parent=47 // pred_region
          %s767 = sand.u32 %s131, 1
          %s768 = scalar_lea.sflag [#allocation3], %s767
          %s769 = sand.u32 %s131, 1
          %s770 = smul.addr %s769, 128
          %s771 = scalar_lea.vmem [#allocation2], %s770
          %772 = dma.done %s768, 2048
        $region52: #{tpu_custom_call.1} parent=47 // pred_fallthru
          _
      $region48: #{tpu_custom_call.1} parent=5 // pred_fallthru
        _
    $region6: #{tpu_custom_call.1} parent=1 // loop_footer
      %s16 = sadd.s32 1, %s12
    $region7: #{tpu_custom_call.1} parent=1 // loop_footer_branch
      %11 = sbr.rel target = $region3
    $region8: #{tpu_custom_call.1} parent=1 // loop_exit
      _
    %773 = vsyncpa [#allocation3], 1
    %s774 = scalar_lea.sflag [#allocation3], 1
    %775 = vsyncpa %s774, 1

</llo_original>
